<compile_context>
chip_gen: v6e
topology: v6e:2x2x1
jax: 0.10.0
libtpu: 0.0.40
codegen_flags: <defaults>
</compile_context>

<pallas_src>
import math

import jax
import jax.numpy as jnp
from jax.experimental import pallas as pl
from jax.experimental.pallas import tpu as pltpu

_SQRT_2_OVER_PI = math.sqrt(2.0 / math.pi)
_GELU_COEFF = 0.044715
_LANES = 128
# ~2 MiB input blocks: >=85% of HBM roofline on v5e/v6e/v7x, and
# (2 in + 2 out) double-buffered blocks ~= 8 MiB << scoped-VMEM defaults.
_TARGET_BLOCK_BYTES = 2 * 1024 * 1024


def _sublane_pack(dtype) -> int:
    """Second-minor packing requirement: 8 (32-bit), 16 (16-bit), 32 (8-bit)."""
    itemsize = jnp.dtype(dtype).itemsize
    return {4: 8, 2: 16, 1: 32}.get(itemsize, 8)


def _gelu_kernel(x_ref, o_ref):
    # Compute in f32 regardless of input dtype (v5e has no bf16 VPU/EUP);
    # single downcast at the store.  tanh -> EUP slot.
    x = x_ref[...].astype(jnp.float32)
    inner = _SQRT_2_OVER_PI * (x + _GELU_COEFF * (x * x * x))
    y = 0.5 * x * (1.0 + jnp.tanh(inner))
    o_ref[...] = y.astype(o_ref.dtype)


def gelu(x, *, block_bytes: int = _TARGET_BLOCK_BYTES):
    """tanh-approximate GELU, elementwise over any input shape."""
    orig_shape = x.shape
    n = x.size
    if n == 0:
        return x

    dtype = x.dtype
    itemsize = jnp.dtype(dtype).itemsize
    sub_pack = _sublane_pack(dtype)

    # Lane-dense view: (rows, 128).
    if n % _LANES == 0:
        # Common case: zero-copy reshape, no pad, no slice afterwards.
        rows = n // _LANES
        pad = 0
        x2 = x.reshape(rows, _LANES)
    else:
        # Ragged fallback: pad only to the next multiple of 128 (< 128 extra
        # elements).  GELU(0) == 0 and the tail is sliced off below.
        rows = pl.cdiv(n, _LANES)
        pad = rows * _LANES - n
        x2 = jnp.pad(x.reshape(-1), (0, pad)).reshape(rows, _LANES)

    # Row-tile sized by bytes (dtype-aware), rounded down to the dtype's
    # sublane packing.  Small inputs take a single block equal to the full
    # array (always a legal block shape).  Large inputs: ~2 MiB tiles with a
    # ragged last block handled by Pallas boundary masking, so `rows` never
    # needs rounding up to a multiple of the tile.
    rt_target = max(sub_pack,
                    (block_bytes // (_LANES * itemsize)) // sub_pack * sub_pack)
    rt = rows if rows <= rt_target else rt_target
    grid = (pl.cdiv(rows, rt),)

    out = pl.pallas_call(
        _gelu_kernel,
        out_shape=jax.ShapeDtypeStruct((rows, _LANES), dtype),
        grid_spec=pltpu.PrefetchScalarGridSpec(
            num_scalar_prefetch=0,
            grid=grid,
            in_specs=[pl.BlockSpec((rt, _LANES), lambda i: (i, 0))],
            out_specs=pl.BlockSpec((rt, _LANES), lambda i: (i, 0)),
        ),
        compiler_params=pltpu.CompilerParams(
            # Elementwise + row-tiled: grid axis shards across both
            # TensorCores on v7x; no-op on single-TC v5e/v6e.
            dimension_semantics=("parallel",),
        ),
    )(x2)

    if pad:
        return out.reshape(-1)[:n].reshape(orig_shape)
    return out.reshape(orig_shape)


def _gelu_ref(x):
    xf = x.astype(jnp.float32)
    y = 0.5 * xf * (1.0 + jnp.tanh(_SQRT_2_OVER_PI * (xf + _GELU_COEFF * xf ** 3)))
    return y.astype(x.dtype)


if __name__ == "__main__":
    key = jax.random.PRNGKey(0)

    # Transformer-activation-style shape: total size is a multiple of 128,
    # exercises the zero-copy fast path.
    batch, seq, hidden = 2, 8, 32
    x = jax.random.normal(key, (batch, seq, hidden), dtype=jnp.float32)
    y = jax.block_until_ready(gelu(x))
    assert y.shape == x.shape and y.dtype == x.dtype
    assert jnp.max(jnp.abs(y - _gelu_ref(x))) < 1e-5

    # Ragged shape: exercises the minimal-pad fallback path.
    key2 = jax.random.PRNGKey(1)
    x_r = jax.random.normal(key2, (3, 5, 7), dtype=jnp.float32)
    y_r = jax.block_until_ready(gelu(x_r))
    assert y_r.shape == x_r.shape and y_r.dtype == x_r.dtype
    assert jnp.max(jnp.abs(y_r - _gelu_ref(x_r))) < 1e-5

    print("KERNEL_OK")
</pallas_src>

<mosaic_0001>
module attributes {stable_mosaic.version = 11 : i64} {
  func.func @_gelu_kernel(%arg0: i32, %arg1: memref<4x128xf32, #tpu.memory_space<vmem>>, %arg2: memref<4x128xf32, #tpu.memory_space<vmem>>) attributes {dimension_semantics = [#tpu.dimension_semantics<parallel>], iteration_bounds = array<i64: 1>, scalar_prefetch = 0 : i64, scratch_operands = 0 : i64, tpu.core_type = #tpu.core_type<tc>, window_params = [{transform_indices = @transform_0, window_bounds = array<i64: 4, 128>}, {transform_indices = @transform_1, window_bounds = array<i64: 4, 128>}]} {
    %c0 = arith.constant 0 : index
    %c0_0 = arith.constant 0 : index
    %0 = vector.load %arg1[%c0, %c0_0] : memref<4x128xf32, #tpu.memory_space<vmem>>, vector<4x128xf32>
    %1 = arith.mulf %0, %0 : vector<4x128xf32>
    %2 = arith.mulf %1, %0 : vector<4x128xf32>
    %cst = arith.constant 4.471500e-02 : f32
    %3 = vector.broadcast %cst : f32 to vector<4x128xf32>
    %4 = arith.mulf %3, %2 : vector<4x128xf32>
    %5 = arith.addf %0, %4 : vector<4x128xf32>
    %cst_1 = arith.constant 0.797884583 : f32
    %6 = vector.broadcast %cst_1 : f32 to vector<4x128xf32>
    %7 = arith.mulf %6, %5 : vector<4x128xf32>
    %cst_2 = arith.constant 5.000000e-01 : f32
    %8 = vector.broadcast %cst_2 : f32 to vector<4x128xf32>
    %9 = arith.mulf %8, %0 : vector<4x128xf32>
    %10 = math.tanh %7 : vector<4x128xf32>
    %cst_3 = arith.constant 1.000000e+00 : f32
    %11 = vector.broadcast %cst_3 : f32 to vector<4x128xf32>
    %12 = arith.addf %11, %10 : vector<4x128xf32>
    %13 = arith.mulf %9, %12 : vector<4x128xf32>
    %c0_4 = arith.constant 0 : index
    %c0_5 = arith.constant 0 : index
    %14 = vector.load %arg2[%c0_4, %c0_5] : memref<4x128xf32, #tpu.memory_space<vmem>>, vector<4x128xf32>
    tpu.vector_store %arg2[%c0_4, %c0_5], %13 {strides = array<i32>} : memref<4x128xf32, #tpu.memory_space<vmem>>, vector<4x128xf32>,
    return
  }
  func.func @transform_0(%arg0: i32) -> (i32, i32) {
    %c0_i32 = arith.constant 0 : i32
    %c0_i32_0 = arith.constant 0 : i32
    return %arg0, %c0_i32 : i32, i32
  }
  func.func @transform_1(%arg0: i32) -> (i32, i32) {
    %c0_i32 = arith.constant 0 : i32
    %c0_i32_0 = arith.constant 0 : i32
    return %arg0, %c0_i32 : i32, i32
  }
}

</mosaic_0001>

<llo_original>
// kernel: tpu_custom_call.1
$region0: #{tpu_custom_call.1}
  #allocation0 [shape = 'u32[]', space=smem, size = 0x4, offset = 0x4, fixed_abs, tag = 'smem constant byte address 0x4 - core index']
  #allocation1 [shape = 'u32[144,128]{1,0:T(1,128)}', space=vmem, size = 0x12000, scoped, tag = 'internal scratch']
  %s0 = inlined_call_operand.hbm [shape: f32[4,128], index: 0, kind: input, shape index: {}]
  %s1 = inlined_call_operand.hbm [shape: f32[4,128], index: 1, kind: output, shape index: {}]
  %s2 = sld [smem:[#allocation0]]
  $region18: #{tpu_custom_call.1} parent=0
    _
  %s4 = ssub.s32 1, %s2
  %s5 = scalar_select 0, %s4, %s2
  $region1: #{tpu_custom_call.1} parent=0
    #allocation2 [shape = 'u8[2048]{0}', space=vmem, size = 0x800, scoped, tag = 'input window, operand 0, single buffered']
    #allocation3 [shape = 's32[1]{0}', space=sflag, size = 0x4, scoped, tag = 'scoped memory for tpu_custom_call.1']
    #allocation4 [shape = 's32[1]{0}', space=sflag, size = 0x4, scoped, tag = 'scoped memory for tpu_custom_call.1']
    #allocation5 [shape = 'u8[2048]{0}', space=vmem, size = 0x800, scoped, tag = 'output window, operand 0, single buffered']
    %6 = vsyncpa [#allocation3], 0
    %7 = vsyncpa [#allocation4], 0
    // Predicated region
    $region2: #{tpu_custom_call.1} parent=1 // pred_check
      _
    $region3: #{tpu_custom_call.1} parent=1 // pred_check_branch
      %9 = sbr.rel (0) target = $region5
    $region4: #{tpu_custom_call.1} parent=1 // pred_region
      %s11 = ssub.s32 64, 64
      %12 = vsyncadd [#allocation3], %s11
      %s14 = sshll.u32 [#allocation2], 4
      %s15 = int_to_ptr.vmem [resolvable:$true] %s14
      %17 = dma.hbm_to_vmem [thread:$0]  %s0, 64, %s15, [#allocation3]
    $region5: #{tpu_custom_call.1} parent=1 // pred_fallthru
      _
    // Predicated region
    $region6: #{tpu_custom_call.1} parent=1 // pred_check
      _
    $region7: #{tpu_custom_call.1} parent=1 // pred_check_branch
      %19 = sbr.rel (0) target = $region9
    $region8: #{tpu_custom_call.1} parent=1 // pred_region
      %20 = dma.done [#allocation3], 64
    $region9: #{tpu_custom_call.1} parent=1 // pred_fallthru
      _
    %v21 = vld [vmem:[#allocation2] sm:$0xf]
    %v22 = vmul.f32 %v21, %v21
    %v23 = vmul.f32 %v22, %v21
    %v24 = vmul.f32 %v23, 0.044715
    %v25 = vadd.f32 %v21, %v24
    %v26 = vmul.f32 %v25, 0.7978846
    %v27 = vmul.f32 %v21, 0.5
    %v28 = vtanh.pop %v26
    %v29 = vadd.f32 %v28, 1.0
    %v30 = vmul.f32 %v27, %v29
    %31 = vst [vmem:[#allocation5] sm:$0xf] %v30
    // Predicated region
    $region10: #{tpu_custom_call.1} parent=1 // pred_check
      _
    $region11: #{tpu_custom_call.1} parent=1 // pred_check_branch
      %33 = sbr.rel (0) target = $region13
    $region12: #{tpu_custom_call.1} parent=1 // pred_region
      %s35 = ssub.s32 64, 64
      %36 = vsyncadd [#allocation4], %s35
      %s38 = sshll.u32 [#allocation5], 4
      %s39 = int_to_ptr.vmem [resolvable:$true] %s38
      %41 = dma.vmem_to_hbm [thread:$0]  %s39, 64, %s1, [#allocation4]
    $region13: #{tpu_custom_call.1} parent=1 // pred_fallthru
      _
    // Predicated region
    $region14: #{tpu_custom_call.1} parent=1 // pred_check
      _
    $region15: #{tpu_custom_call.1} parent=1 // pred_check_branch
      %43 = sbr.rel (0) target = $region17
    $region16: #{tpu_custom_call.1} parent=1 // pred_region
      %44 = dma.done [#allocation4], 64
    $region17: #{tpu_custom_call.1} parent=1 // pred_fallthru
      _
    %45 = vsyncpa [#allocation3], 1
    %46 = vsyncpa [#allocation4], 1

</llo_original>
